<compile_context>
chip_gen: v6e
topology: v6e:2x2x1
jax: 0.10.0
libtpu: 0.0.40
codegen_flags: <defaults>
</compile_context>

<pallas_src>
import functools

import jax
import jax.numpy as jnp
from jax.experimental import pallas as pl
from jax.experimental.pallas import tpu as pltpu


def _residual_kernel(seed_ref, x_ref, g_ref, b_ref, w_ref, bias_ref, o_ref,
                     *, eps, drop_prob, train):
    # --- LayerNorm over the last (hidden) axis, f32 statistics ---
    x = x_ref[...].astype(jnp.float32)
    mean = jnp.mean(x, axis=-1, keepdims=True)
    centered = x - mean
    var = jnp.mean(centered * centered, axis=-1, keepdims=True)
    y = centered * jax.lax.rsqrt(var + eps) * g_ref[...] + b_ref[...]

    # --- sublayer: Linear(hidden, hidden) on the MXU (bf16 operands, f32 acc) ---
    z = jnp.dot(y.astype(jnp.bfloat16), w_ref[...],
                preferred_element_type=jnp.float32) + bias_ref[...]

    # --- Dropout (inverted dropout, PyTorch training semantics) ---
    # Stateless counter-hash RNG: unique per element across the whole array and
    # per grid tile (global row offset), so tiling never repeats a mask.
    if train and drop_prob > 0.0:
        tm, h = z.shape
        row0 = (pl.program_id(0) * tm).astype(jnp.uint32)
        rows = jax.lax.broadcasted_iota(jnp.int32, (tm, h), 0).astype(jnp.uint32) + row0
        cols = jax.lax.broadcasted_iota(jnp.int32, (tm, h), 1).astype(jnp.uint32)
        seed_u = seed_ref[0].astype(jnp.uint32)

        key = rows * jnp.uint32(h) + cols
        key = key ^ (seed_u * jnp.uint32(0x9E3779B9))
        # murmur3-style integer finalizer
        key = key ^ (key >> jnp.uint32(16))
        key = key * jnp.uint32(0x7FEB352D)
        key = key ^ (key >> jnp.uint32(15))
        key = key * jnp.uint32(0x846CA68B)
        key = key ^ (key >> jnp.uint32(16))

        # Integer threshold on the top 24 bits (no float convert / multiply).
        thresh24 = min(int(drop_prob * (1 << 24)), (1 << 24) - 1)
        keep = (key >> jnp.uint32(8)).astype(jnp.int32) >= jnp.int32(thresh24)
        z = jnp.where(keep, z * jnp.float32(1.0 / (1.0 - drop_prob)),
                      jnp.float32(0.0))

    # --- residual add: re-read x (already VMEM-resident) instead of keeping a
    #     second f32 copy live across the matmul ---
    o_ref[...] = (z + x_ref[...].astype(jnp.float32)).astype(o_ref.dtype)


def residual_connection(x, gamma, beta, w, bias, *, seed=0, drop_prob=0.1,
                        train=True, eps=1e-5, block_rows=256):
    """x: (B, S, H) float32. Returns (B, S, H)."""
    B, S, H = x.shape
    rows = B * S
    x2 = x.reshape(rows, H)
    g2 = gamma.reshape(1, H).astype(jnp.float32)
    b2 = beta.reshape(1, H).astype(jnp.float32)
    bias2 = bias.reshape(1, H).astype(jnp.float32)
    w_bf16 = w.astype(jnp.bfloat16)           # half the HBM/VMEM for W, MXU-native
    seed_arr = jnp.array([seed], dtype=jnp.int32)

    tm = min(block_rows, rows)
    grid = (pl.cdiv(rows, tm),)

    kernel = functools.partial(_residual_kernel, eps=eps,
                               drop_prob=float(drop_prob), train=bool(train))

    out = pl.pallas_call(
        kernel,
        out_shape=jax.ShapeDtypeStruct((rows, H), x.dtype),
        grid_spec=pltpu.PrefetchScalarGridSpec(
            num_scalar_prefetch=1,            # seed lands in SMEM
            grid=grid,
            in_specs=[
                pl.BlockSpec((tm, H), lambda i, seed: (i, 0)),   # x (row-tiled)
                pl.BlockSpec((1, H),  lambda i, seed: (0, 0)),   # gamma (resident)
                pl.BlockSpec((1, H),  lambda i, seed: (0, 0)),   # beta  (resident)
                pl.BlockSpec((H, H),  lambda i, seed: (0, 0)),   # W bf16 (resident)
                pl.BlockSpec((1, H),  lambda i, seed: (0, 0)),   # bias  (resident)
            ],
            out_specs=pl.BlockSpec((tm, H), lambda i, seed: (i, 0)),
        ),
        compiler_params=pltpu.CompilerParams(
            dimension_semantics=("parallel",),        # shard row tiles across TCs (v7x)
            vmem_limit_bytes=64 * 1024 * 1024),
    )(seed_arr, x2, g2, b2, w_bf16, bias2)
    return out.reshape(B, S, H)


def _reference_eval(x, gamma, beta, w_bf16, bias, eps=1e-5):
    """Pure-JAX reference with dropout disabled (eval mode); same bf16 matmul cast."""
    mean = jnp.mean(x, axis=-1, keepdims=True)
    var = jnp.mean((x - mean) ** 2, axis=-1, keepdims=True)
    xn = (x - mean) / jnp.sqrt(var + eps)
    y = xn * gamma + beta
    z = jnp.einsum("bsh,hk->bsk", y.astype(jnp.bfloat16), w_bf16,
                   preferred_element_type=jnp.float32) + bias
    return z + x


if __name__ == "__main__":
    # Small but lane-dense shapes: H = 128 fills the 128-lane axis, and
    # block_rows=64 over 128 rows gives a 2-step row grid (exercises tiling +
    # per-tile dropout masks).
    B, S, H = 2, 64, 128
    key = jax.random.PRNGKey(0)
    kx, kw, kb = jax.random.split(key, 3)

    x = jax.random.normal(kx, (B, S, H), dtype=jnp.float32)
    # LayerNorm params (PyTorch default init: weight=1, bias=0)
    gamma = jnp.ones((H,), dtype=jnp.float32)
    beta = jnp.zeros((H,), dtype=jnp.float32)
    # Deterministic sublayer (Linear) params
    w = jax.random.normal(kw, (H, H), dtype=jnp.float32) * 0.02
    bias = jax.random.normal(kb, (H,), dtype=jnp.float32) * 0.02

    # Eval-mode sanity check against the pure-JAX reference (dropout = identity).
    out_eval = residual_connection(x, gamma, beta, w, bias, train=False,
                                   block_rows=64)
    out_eval = jax.block_until_ready(out_eval)
    ref = _reference_eval(x, gamma, beta, w.astype(jnp.bfloat16), bias)
    assert jnp.allclose(out_eval, ref, atol=1e-2, rtol=1e-2), "eval-mode mismatch"

    # Training-mode run (in-kernel stateless-hash dropout, deterministic seed).
    out_train = residual_connection(x, gamma, beta, w, bias, seed=0,
                                    drop_prob=0.1, train=True, block_rows=64)
    out_train = jax.block_until_ready(out_train)
    assert out_train.shape == (B, S, H)
    assert bool(jnp.all(jnp.isfinite(out_train)))

    print("KERNEL_OK")
</pallas_src>

<mosaic_0001>
module attributes {stable_mosaic.version = 11 : i64} {
  func.func @_residual_kernel(%arg0: i32, %arg1: memref<1xi32, #tpu.memory_space<smem>>, %arg2: memref<64x128xf32, #tpu.memory_space<vmem>>, %arg3: memref<1x128xf32, #tpu.memory_space<vmem>>, %arg4: memref<1x128xf32, #tpu.memory_space<vmem>>, %arg5: memref<128x128xbf16, #tpu.memory_space<vmem>>, %arg6: memref<1x128xf32, #tpu.memory_space<vmem>>, %arg7: memref<64x128xf32, #tpu.memory_space<vmem>>) attributes {dimension_semantics = [#tpu.dimension_semantics<parallel>], iteration_bounds = array<i64: 2>, scalar_prefetch = 1 : i64, scratch_operands = 0 : i64, tpu.core_type = #tpu.core_type<tc>, window_params = [{transform_indices = @transform_0, window_bounds = array<i64: 64, 128>}, {pipeline_mode = #tpu.pipeline_mode<synchronous>, transform_indices = @transform_1, window_bounds = array<i64: 1, 128>}, {pipeline_mode = #tpu.pipeline_mode<synchronous>, transform_indices = @transform_2, window_bounds = array<i64: 1, 128>}, {pipeline_mode = #tpu.pipeline_mode<synchronous>, transform_indices = @transform_3, window_bounds = array<i64: 128, 128>}, {pipeline_mode = #tpu.pipeline_mode<synchronous>, transform_indices = @transform_4, window_bounds = array<i64: 1, 128>}, {transform_indices = @transform_5, window_bounds = array<i64: 64, 128>}]} {
    %c0 = arith.constant 0 : index
    %c0_0 = arith.constant 0 : index
    %0 = vector.load %arg2[%c0, %c0_0] : memref<64x128xf32, #tpu.memory_space<vmem>>, vector<64x128xf32>
    %cst = arith.constant dense<0.000000e+00> : vector<64xf32>
    %1 = vector.multi_reduction <add>, %0, %cst [1] : vector<64x128xf32> to vector<64xf32>
    %2 = vector.shape_cast %1 : vector<64xf32> to vector<64x1xf32>
    %cst_1 = arith.constant 1.280000e+02 : f32
    %3 = vector.broadcast %cst_1 : f32 to vector<64x1xf32>
    %4 = arith.divf %2, %3 : vector<64x1xf32>
    %5 = vector.broadcast %4 : vector<64x1xf32> to vector<64x128xf32>
    %6 = arith.subf %0, %5 : vector<64x128xf32>
    %7 = arith.mulf %6, %6 : vector<64x128xf32>
    %cst_2 = arith.constant dense<0.000000e+00> : vector<64xf32>
    %8 = vector.multi_reduction <add>, %7, %cst_2 [1] : vector<64x128xf32> to vector<64xf32>
    %9 = vector.shape_cast %8 : vector<64xf32> to vector<64x1xf32>
    %cst_3 = arith.constant 1.280000e+02 : f32
    %10 = vector.broadcast %cst_3 : f32 to vector<64x1xf32>
    %11 = arith.divf %9, %10 : vector<64x1xf32>
    %cst_4 = arith.constant 9.99999974E-6 : f32
    %12 = vector.broadcast %cst_4 : f32 to vector<64x1xf32>
    %13 = arith.addf %11, %12 : vector<64x1xf32>
    %14 = math.rsqrt %13 : vector<64x1xf32>
    %15 = vector.broadcast %14 : vector<64x1xf32> to vector<64x128xf32>
    %16 = arith.mulf %6, %15 : vector<64x128xf32>
    %c0_5 = arith.constant 0 : index
    %c0_6 = arith.constant 0 : index
    %17 = vector.load %arg3[%c0_5, %c0_6] : memref<1x128xf32, #tpu.memory_space<vmem>>, vector<1x128xf32>
    %18 = vector.broadcast %17 : vector<1x128xf32> to vector<64x128xf32>
    %19 = arith.mulf %16, %18 : vector<64x128xf32>
    %c0_7 = arith.constant 0 : index
    %c0_8 = arith.constant 0 : index
    %20 = vector.load %arg4[%c0_7, %c0_8] : memref<1x128xf32, #tpu.memory_space<vmem>>, vector<1x128xf32>
    %21 = vector.broadcast %20 : vector<1x128xf32> to vector<64x128xf32>
    %22 = arith.addf %19, %21 : vector<64x128xf32>
    %23 = arith.truncf %22 : vector<64x128xf32> to vector<64x128xbf16>
    %c0_9 = arith.constant 0 : index
    %c0_10 = arith.constant 0 : index
    %24 = vector.load %arg5[%c0_9, %c0_10] : memref<128x128xbf16, #tpu.memory_space<vmem>>, vector<128x128xbf16>
    %cst_11 = arith.constant dense<0.000000e+00> : vector<64x128xf32>
    %25 = tpu.matmul %23, %24, %cst_11 {dimension_numbers = #tpu.dot_dimension_numbers<[1], [0], [0], [1], [0, 0, 1, 1], [], []>} : vector<64x128xbf16>, vector<128x128xbf16>, vector<64x128xf32> -> vector<64x128xf32>
    %c0_12 = arith.constant 0 : index
    %c0_13 = arith.constant 0 : index
    %26 = vector.load %arg6[%c0_12, %c0_13] : memref<1x128xf32, #tpu.memory_space<vmem>>, vector<1x128xf32>
    %27 = vector.broadcast %26 : vector<1x128xf32> to vector<64x128xf32>
    %28 = arith.addf %25, %27 : vector<64x128xf32>
    %c0_14 = arith.constant 0 : index
    %c0_15 = arith.constant 0 : index
    %29 = vector.load %arg2[%c0_14, %c0_15] : memref<64x128xf32, #tpu.memory_space<vmem>>, vector<64x128xf32>
    %30 = arith.addf %28, %29 : vector<64x128xf32>
    %c0_16 = arith.constant 0 : index
    %c0_17 = arith.constant 0 : index
    %31 = vector.load %arg7[%c0_16, %c0_17] : memref<64x128xf32, #tpu.memory_space<vmem>>, vector<64x128xf32>
    tpu.vector_store %arg7[%c0_16, %c0_17], %30 {strides = array<i32>} : memref<64x128xf32, #tpu.memory_space<vmem>>, vector<64x128xf32>,
    return
  }
  func.func @transform_0(%arg0: i32, %arg1: memref<1xi32, #tpu.memory_space<smem>>) -> (i32, i32) {
    %c0_i32 = arith.constant 0 : i32
    %c0_i32_0 = arith.constant 0 : i32
    return %arg0, %c0_i32 : i32, i32
  }
  func.func @transform_1(%arg0: i32, %arg1: memref<1xi32, #tpu.memory_space<smem>>) -> (i32, i32) {
    %c0_i32 = arith.constant 0 : i32
    %c0_i32_0 = arith.constant 0 : i32
    %c0_i32_1 = arith.constant 0 : i32
    return %c0_i32, %c0_i32_0 : i32, i32
  }
  func.func @transform_2(%arg0: i32, %arg1: memref<1xi32, #tpu.memory_space<smem>>) -> (i32, i32) {
    %c0_i32 = arith.constant 0 : i32
    %c0_i32_0 = arith.constant 0 : i32
    %c0_i32_1 = arith.constant 0 : i32
    return %c0_i32, %c0_i32_0 : i32, i32
  }
  func.func @transform_3(%arg0: i32, %arg1: memref<1xi32, #tpu.memory_space<smem>>) -> (i32, i32) {
    %c0_i32 = arith.constant 0 : i32
    %c0_i32_0 = arith.constant 0 : i32
    %c0_i32_1 = arith.constant 0 : i32
    return %c0_i32, %c0_i32_0 : i32, i32
  }
  func.func @transform_4(%arg0: i32, %arg1: memref<1xi32, #tpu.memory_space<smem>>) -> (i32, i32) {
    %c0_i32 = arith.constant 0 : i32
    %c0_i32_0 = arith.constant 0 : i32
    %c0_i32_1 = arith.constant 0 : i32
    return %c0_i32, %c0_i32_0 : i32, i32
  }
  func.func @transform_5(%arg0: i32, %arg1: memref<1xi32, #tpu.memory_space<smem>>) -> (i32, i32) {
    %c0_i32 = arith.constant 0 : i32
    %c0_i32_0 = arith.constant 0 : i32
    return %arg0, %c0_i32 : i32, i32
  }
}

</mosaic_0001>

<llo_original>
// kernel: tpu_custom_call.1
$region0: #{tpu_custom_call.1}
  #allocation0 [shape = 'u32[]', space=smem, size = 0x4, offset = 0x4, fixed_abs, tag = 'smem constant byte address 0x4 - core index']
  #allocation1 [shape = 'u32[144,128]{1,0:T(1,128)}', space=vmem, size = 0x12000, scoped, tag = 'internal scratch']
  #allocation2 [shape = 's32[1]{0}', space=sflag, size = 0x4, scoped, tag = 'scoped memory for tpu_custom_call.1']
  #allocation3 [shape = 's32[1]{0:T(128)S(6)}', space=smem, size = 0x200, scoped, tag = 'prefetched SMEM operand 0']
  %s0 = inlined_call_operand.<no memory space> [shape: s32[1], index: 0, kind: input, shape index: {}]
  %s1 = inlined_call_operand.hbm [shape: f32[128,128], index: 1, kind: input, shape index: {}]
  %s2 = inlined_call_operand.vmem [shape: f32[1,128], index: 2, kind: input, shape index: {}]
  %s3 = inlined_call_operand.vmem [shape: f32[1,128], index: 3, kind: input, shape index: {}]
  %s4 = inlined_call_operand.hbm [shape: bf16[128,128], index: 4, kind: input, shape index: {}]
  %s5 = inlined_call_operand.vmem [shape: f32[1,128], index: 5, kind: input, shape index: {}]
  %s6 = inlined_call_operand.hbm [shape: f32[128,128], index: 6, kind: output, shape index: {}]
  %s7 = sld [smem:[#allocation0]]
  $region61: #{tpu_custom_call.1} parent=0
    _
  %s9 = ssub.s32 1, %s7
  %s10 = scalar_select 0, %s9, %s7
  %11 = sst [smem:[#allocation3]] %s0
  $region1: #{tpu_custom_call.1} parent=0
    #allocation4 [shape = 'u8[65536]{0}', space=vmem, size = 0x10000, scoped, tag = 'input window, operand 1']
    #allocation5 [shape = 's32[2]{0}', space=sflag, size = 0x8, scoped, tag = 'scoped memory for tpu_custom_call.1']
    #allocation6 [shape = 's32[2]{0}', space=sflag, size = 0x8, scoped, tag = 'scoped memory for tpu_custom_call.1']
    #allocation7 [shape = 'u8[32768]{0}', space=vmem, size = 0x8000, scoped, tag = 'input window, operand 4, single buffered']
    #allocation8 [shape = 's32[1]{0}', space=sflag, size = 0x4, scoped, tag = 'scoped memory for tpu_custom_call.1']
    #allocation9 [shape = 'u8[65536]{0}', space=vmem, size = 0x10000, scoped, tag = 'output window, operand 0']
    %12 = vsyncpa [#allocation5], 0
    %s13 = scalar_lea.sflag [#allocation5], 1
    %14 = vsyncpa %s13, 0
    %15 = vsyncpa [#allocation8], 0
    %16 = vsyncpa [#allocation6], 0
    %s17 = scalar_lea.sflag [#allocation6], 1
    %18 = vsyncpa %s17, 0
    loop: start=0, step=1, limit=4
    $region2: #{tpu_custom_call.1} parent=1 // loop_pre_header
      _
    $region3: #{tpu_custom_call.1} parent=1 // loop_header
      %s20 = sphi 0, %s24
      %p21 = scmp.ge.s32.totalorder %s20, 4
      %s30 = sphi 0, %s32
      %s33 = sphi 0, %s30
      %s34 = sphi 0, %s33
      %s50 = sphi 0, %s34
      %s54 = sphi 0, %s54
      %s56 = sphi 0, %s54
      %s57 = sphi 0, %s56
      %s71 = sphi 0, %s57
      %s75 = sphi 0, %s75
      %s77 = sphi 0, %s75
      %s78 = sphi 0, %s77
      %s92 = sphi 0, %s78
      %s96 = sphi 0, %s96
      %s98 = sphi 0, %s96
      %s99 = sphi 0, %s98
      %s113 = sphi 0, %s99
      %s117 = sphi 0, %s117
      %s119 = sphi 0, %s117
      %s120 = sphi 0, %s119
      %s134 = sphi 0, %s120
      %s140 = sphi 0, %s142
      %s143 = sphi 0, %s140
      %s144 = sphi 0, %s143
      %s160 = sphi 0, %s144
    $region4: #{tpu_custom_call.1} parent=1 // loop_header_branch
      %23 = sbr.rel (%p21) target = $region8
    $region5: #{tpu_custom_call.1} parent=1 // loop_body
      %s25 = ssub.s32 %s20, 1
      %s26 = ssub.s32 %s20, 2
      %s27 = sadd.s32 %s20, 1
      %s28 = ssub.s32 %s20, %s27
      %p29 = scmp.eq.s32.totalorder %s28, 0
      %s31 = sadd.s32 %s30, 1
      %s32 = scalar_select %p29, %s30, %s31
      %p35 = pneg %p29
      %p36 = scmp.eq.s32.totalorder %s20, 1
      %p37 = por %p35, %p36
      %p38 = scmp.ne.s32.totalorder %s30, %s33
      %p39 = scmp.eq.s32.totalorder %s20, 0
      %p40 = por %p38, %p39
      %p41 = scmp.ne.s32.totalorder %s30, %s33
      %p42 = scmp.eq.s32.totalorder %s25, 1
      %p43 = por %p41, %p42
      %p44 = scmp.ne.s32.totalorder %s33, %s34
      %p45 = scmp.eq.s32.totalorder %s25, 0
      %p46 = por %p44, %p45
      %p47 = scmp.ne.s32.totalorder %s33, %s34
      %p48 = scmp.eq.s32.totalorder %s26, 1
      %p49 = por %p47, %p48
      %p51 = scmp.ne.s32.totalorder %s34, %s50
      %p52 = scmp.eq.s32.totalorder %s26, 0
      %p53 = por %p51, %p52
      %s55 = sadd.s32 %s54, 1
      %p58 = scmp.eq.s32.totalorder %s20, 1
      %p59 = scmp.ne.s32.totalorder %s54, %s56
      %p60 = scmp.eq.s32.totalorder %s20, 0
      %p61 = por %p59, %p60
      %p62 = scmp.ne.s32.totalorder %s54, %s56
      %p63 = scmp.eq.s32.totalorder %s25, 1
      %p64 = por %p62, %p63
      %p65 = scmp.ne.s32.totalorder %s56, %s57
      %p66 = scmp.eq.s32.totalorder %s25, 0
      %p67 = por %p65, %p66
      %p68 = scmp.ne.s32.totalorder %s56, %s57
      %p69 = scmp.eq.s32.totalorder %s26, 1
      %p70 = por %p68, %p69
      %p72 = scmp.ne.s32.totalorder %s57, %s71
      %p73 = scmp.eq.s32.totalorder %s26, 0
      %p74 = por %p72, %p73
      %s76 = sadd.s32 %s75, 1
      %p79 = scmp.eq.s32.totalorder %s20, 1
      %p80 = scmp.ne.s32.totalorder %s75, %s77
      %p81 = scmp.eq.s32.totalorder %s20, 0
      %p82 = por %p80, %p81
      %p83 = scmp.ne.s32.totalorder %s75, %s77
      %p84 = scmp.eq.s32.totalorder %s25, 1
      %p85 = por %p83, %p84
      %p86 = scmp.ne.s32.totalorder %s77, %s78
      %p87 = scmp.eq.s32.totalorder %s25, 0
      %p88 = por %p86, %p87
      %p89 = scmp.ne.s32.totalorder %s77, %s78
      %p90 = scmp.eq.s32.totalorder %s26, 1
      %p91 = por %p89, %p90
      %p93 = scmp.ne.s32.totalorder %s78, %s92
      %p94 = scmp.eq.s32.totalorder %s26, 0
      %p95 = por %p93, %p94
      %s97 = sadd.s32 %s96, 1
      %p100 = scmp.eq.s32.totalorder %s20, 1
      %p101 = scmp.ne.s32.totalorder %s96, %s98
      %p102 = scmp.eq.s32.totalorder %s20, 0
      %p103 = por %p101, %p102
      %p104 = scmp.ne.s32.totalorder %s96, %s98
      %p105 = scmp.eq.s32.totalorder %s25, 1
      %p106 = por %p104, %p105
      %p107 = scmp.ne.s32.totalorder %s98, %s99
      %p108 = scmp.eq.s32.totalorder %s25, 0
      %p109 = por %p107, %p108
      %p110 = scmp.ne.s32.totalorder %s98, %s99
      %p111 = scmp.eq.s32.totalorder %s26, 1
      %p112 = por %p110, %p111
      %p114 = scmp.ne.s32.totalorder %s99, %s113
      %p115 = scmp.eq.s32.totalorder %s26, 0
      %p116 = por %p114, %p115
      %s118 = sadd.s32 %s117, 1
      %p121 = scmp.eq.s32.totalorder %s20, 1
      %p122 = scmp.ne.s32.totalorder %s117, %s119
      %p123 = scmp.eq.s32.totalorder %s20, 0
      %p124 = por %p122, %p123
      %p125 = scmp.ne.s32.totalorder %s117, %s119
      %p126 = scmp.eq.s32.totalorder %s25, 1
      %p127 = por %p125, %p126
      %p128 = scmp.ne.s32.totalorder %s119, %s120
      %p129 = scmp.eq.s32.totalorder %s25, 0
      %p130 = por %p128, %p129
      %p131 = scmp.ne.s32.totalorder %s119, %s120
      %p132 = scmp.eq.s32.totalorder %s26, 1
      %p133 = por %p131, %p132
      %p135 = scmp.ne.s32.totalorder %s120, %s134
      %p136 = scmp.eq.s32.totalorder %s26, 0
      %p137 = por %p135, %p136
      %s138 = ssub.s32 %s20, %s27
      %p139 = scmp.eq.s32.totalorder %s138, 0
      %s141 = sadd.s32 %s140, 1
      %s142 = scalar_select %p139, %s140, %s141
      %p145 = pneg %p139
      %p146 = scmp.eq.s32.totalorder %s20, 1
      %p147 = por %p145, %p146
      %p148 = scmp.ne.s32.totalorder %s140, %s143
      %p149 = scmp.eq.s32.totalorder %s20, 0
      %p150 = por %p148, %p149
      %p151 = scmp.ne.s32.totalorder %s140, %s143
      %p152 = scmp.eq.s32.totalorder %s25, 1
      %p153 = por %p151, %p152
      %p154 = scmp.ne.s32.totalorder %s143, %s144
      %p155 = scmp.eq.s32.totalorder %s25, 0
      %p156 = por %p154, %p155
      %p157 = scmp.ne.s32.totalorder %s143, %s144
      %p158 = scmp.eq.s32.totalorder %s26, 1
      %p159 = por %p157, %p158
      %p161 = scmp.ne.s32.totalorder %s144, %s160
      %p162 = scmp.eq.s32.totalorder %s26, 0
      %p163 = por %p161, %p162
      %p164 = scmp.le.s32.totalorder 1, %s20
      %p165 = scmp.lt.s32.totalorder %s20, 3
      %p166 = pnand %p164, %p165
      %p167 = pneg %p166
      // Predicated region
      $region9: #{tpu_custom_call.1} parent=5 // pred_check
        _
      $region10: #{tpu_custom_call.1} parent=5 // pred_check_branch
        %169 = sbr.rel (%p166) target = $region12
      $region11: #{tpu_custom_call.1} parent=5 // pred_region
        %s170 = ssub.s32 %s20, 1
        // Predicated region
        $region13: #{tpu_custom_call.1} parent=11 // pred_check
          %p171 = pneg %p67
        $region14: #{tpu_custom_call.1} parent=11 // pred_check_branch
          %173 = sbr.rel (%p171) target = $region16
        $region15: #{tpu_custom_call.1} parent=11 // pred_region
          _
        $region16: #{tpu_custom_call.1} parent=11 // pred_fallthru
          _
        // Predicated region
        $region17: #{tpu_custom_call.1} parent=11 // pred_check
          %p174 = pneg %p88
        $region18: #{tpu_custom_call.1} parent=11 // pred_check_branch
          %176 = sbr.rel (%p174) target = $region20
        $region19: #{tpu_custom_call.1} parent=11 // pred_region
          _
        $region20: #{tpu_custom_call.1} parent=11 // pred_fallthru
          _
        // Predicated region
        $region21: #{tpu_custom_call.1} parent=11 // pred_check
          %p177 = pneg %p109
        $region22: #{tpu_custom_call.1} parent=11 // pred_check_branch
          %179 = sbr.rel (%p177) target = $region24
        $region23: #{tpu_custom_call.1} parent=11 // pred_region
          %s181 = ssub.s32 1024, 1024
          %182 = vsyncadd [#allocation8], %s181
          %s183 = sshll.u32 [#allocation7], 4
          %s184 = int_to_ptr.vmem [resolvable:$true] %s183
          %189 = dma.hbm_to_vmem [thread:$0]  %s4, 1024, %s184, [#allocation8], 64, 64, 4
        $region24: #{tpu_custom_call.1} parent=11 // pred_fallthru
          _
        // Predicated region
        $region25: #{tpu_custom_call.1} parent=11 // pred_check
          %p190 = pneg %p130
        $region26: #{tpu_custom_call.1} parent=11 // pred_check_branch
          %192 = sbr.rel (%p190) target = $region28
        $region27: #{tpu_custom_call.1} parent=11 // pred_region
          _
        $region28: #{tpu_custom_call.1} parent=11 // pred_fallthru
          _
      $region12: #{tpu_custom_call.1} parent=5 // pred_fallthru
        _
      %p193 = scmp.lt.s32.totalorder %s20, 2
      // Predicated region
      $region29: #{tpu_custom_call.1} parent=5 // pred_check
        %p194 = pneg %p193
      $region30: #{tpu_custom_call.1} parent=5 // pred_check_branch
        %196 = sbr.rel (%p194) target = $region32
      $region31: #{tpu_custom_call.1} parent=5 // pred_region
        // Predicated region
        $region33: #{tpu_custom_call.1} parent=31 // pred_check
          %p197 = pneg %p40
        $region34: #{tpu_custom_call.1} parent=31 // pred_check_branch
          %199 = sbr.rel (%p197) target = $region36
        $region35: #{tpu_custom_call.1} parent=31 // pred_region
          %s200 = sand.u32 %s30, 1
          %s201 = scalar_lea.sflag [#allocation5], %s200
          %s202 = sand.u32 %s30, 1
          %s203 = smul.addr %s202, 64
          %s204 = scalar_lea.vmem [#allocation4], %s203
          %s205 = smul.u32 8, %s20
          %s207 = ssub.s32 1024, 1024
          %208 = vsyncadd %s201, %s207
          %s209 = smul.addr %s205, 128
          %s210 = scalar_lea.hbm %s1, %s209
          %s211 = sshll.u32 %s204, 4
          %s212 = int_to_ptr.vmem [resolvable:$true] %s211
          %217 = dma.hbm_to_vmem [thread:$0]  %s210, 1024, %s212, %s201, 128, 128, 8
        $region36: #{tpu_custom_call.1} parent=31 // pred_fallthru
          _
      $region32: #{tpu_custom_call.1} parent=5 // pred_fallthru
        _
      %p218 = scmp.le.s32.totalorder 1, %s20
      %p219 = scmp.lt.s32.totalorder %s20, 3
      %p220 = pnand %p218, %p219
      %p221 = pneg %p220
      // Predicated region
      $region37: #{tpu_custom_call.1} parent=5 // pred_check
        _
      $region38: #{tpu_custom_call.1} parent=5 // pred_check_branch
        %223 = sbr.rel (%p220) target = $region40
      $region39: #{tpu_custom_call.1} parent=5 // pred_region
        %s224 = ssub.s32 %s20, 1
        %s225 = sand.u32 %s33, 1
        %s226 = scalar_lea.sflag [#allocation5], %s225
        %s227 = sand.u32 %s33, 1
        %s228 = smul.addr %s227, 64
        %s229 = scalar_lea.vmem [#allocation4], %s228
        // Predicated region
        $region41: #{tpu_custom_call.1} parent=39 // pred_check
          %p230 = pneg %p46
        $region42: #{tpu_custom_call.1} parent=39 // pred_check_branch
          %232 = sbr.rel (%p230) target = $region44
        $region43: #{tpu_custom_call.1} parent=39 // pred_region
          %233 = dma.done %s226, 1024
        $region44: #{tpu_custom_call.1} parent=39 // pred_fallthru
          _
        // Predicated region
        $region45: #{tpu_custom_call.1} parent=39 // pred_check
          %p234 = pneg %p109
        $region46: #{tpu_custom_call.1} parent=39 // pred_check_branch
          %236 = sbr.rel (%p234) target = $region48
        $region47: #{tpu_custom_call.1} parent=39 // pred_region
          %237 = dma.done [#allocation8], 1024
        $region48: #{tpu_custom_call.1} parent=39 // pred_fallthru
          _
        %s238 = sand.u32 %s33, 1
        %s239 = scalar_lea.sflag [#allocation5], %s238
        %s240 = sand.u32 %s33, 1
        %s241 = smul.addr %s240, 64
        %s242 = scalar_lea.vmem [#allocation4], %s241
        %p243 = pneg %p46
        %p244 = pneg %p43
        %p245 = pneg %p67
        %p246 = pneg %p64
        %p247 = pneg %p88
        %p248 = pneg %p85
        %p249 = pneg %p109
        %p250 = pneg %p106
        %p251 = pneg %p130
        %p252 = pneg %p127
        %p253 = pneg %p156
        %p254 = pneg %p153
        %s255 = sand.u32 %s143, 1
        %s256 = scalar_lea.sflag [#allocation6], %s255
        %s257 = sand.u32 %s143, 1
        %s258 = smul.addr %s257, 64
        %s259 = scalar_lea.vmem [#allocation9], %s258
        %s260 = smul.u32 8, %s25
        %s261 = smul.u32 8, %s25
        %v263 = vld [vmem:[%s229] sm:$0xff]
        %v264 = vld [vmem:[%s229 + $0x8] sm:$0xff]
        %v265 = vld [vmem:[%s229 + $0x10] sm:$0xff]
        %v266 = vld [vmem:[%s229 + $0x18] sm:$0xff]
        %v267 = vld [vmem:[%s229 + $0x20] sm:$0xff]
        %v268 = vld [vmem:[%s229 + $0x28] sm:$0xff]
        %v269 = vld [vmem:[%s229 + $0x30] sm:$0xff]
        %v270 = vld [vmem:[%s229 + $0x38] sm:$0xff]
        %271 = vadd.xlane.f32.xlu0 %v263
        %v272 = vpop.xlane.xlu0 %271
        %273 = vadd.xlane.f32.xlu0 %v264
        %v274 = vpop.xlane.xlu0 %273
        %275 = vadd.xlane.f32.xlu0 %v265
        %v276 = vpop.xlane.xlu0 %275
        %277 = vadd.xlane.f32.xlu0 %v266
        %v278 = vpop.xlane.xlu0 %277
        %279 = vadd.xlane.f32.xlu0 %v267
        %v280 = vpop.xlane.xlu0 %279
        %281 = vadd.xlane.f32.xlu0 %v268
        %v282 = vpop.xlane.xlu0 %281
        %283 = vadd.xlane.f32.xlu0 %v269
        %v284 = vpop.xlane.xlu0 %283
        %285 = vadd.xlane.f32.xlu0 %v270
        %v286 = vpop.xlane.xlu0 %285
        %v287 = vrcp.pop 128.0
        %v288 = vmul.f32 %v272, %v287
        %v289 = vmul.f32 %v274, %v287
        %v290 = vmul.f32 %v276, %v287
        %v291 = vmul.f32 %v278, %v287
        %v292 = vmul.f32 %v280, %v287
        %v293 = vmul.f32 %v282, %v287
        %v294 = vmul.f32 %v284, %v287
        %v295 = vmul.f32 %v286, %v287
        %v296 = vsub.f32 %v263, %v288
        %v297 = vsub.f32 %v264, %v289
        %v298 = vsub.f32 %v265, %v290
        %v299 = vsub.f32 %v266, %v291
        %v300 = vsub.f32 %v267, %v292
        %v301 = vsub.f32 %v268, %v293
        %v302 = vsub.f32 %v269, %v294
        %v303 = vsub.f32 %v270, %v295
        %v304 = vmul.f32 %v296, %v296
        %v305 = vmul.f32 %v297, %v297
        %v306 = vmul.f32 %v298, %v298
        %v307 = vmul.f32 %v299, %v299
        %v308 = vmul.f32 %v300, %v300
        %v309 = vmul.f32 %v301, %v301
        %v310 = vmul.f32 %v302, %v302
        %v311 = vmul.f32 %v303, %v303
        %312 = vadd.xlane.f32.xlu0 %v304
        %v313 = vpop.xlane.xlu0 %312
        %314 = vadd.xlane.f32.xlu0 %v305
        %v315 = vpop.xlane.xlu0 %314
        %316 = vadd.xlane.f32.xlu0 %v306
        %v317 = vpop.xlane.xlu0 %316
        %318 = vadd.xlane.f32.xlu0 %v307
        %v319 = vpop.xlane.xlu0 %318
        %320 = vadd.xlane.f32.xlu0 %v308
        %v321 = vpop.xlane.xlu0 %320
        %322 = vadd.xlane.f32.xlu0 %v309
        %v323 = vpop.xlane.xlu0 %322
        %324 = vadd.xlane.f32.xlu0 %v310
        %v325 = vpop.xlane.xlu0 %324
        %326 = vadd.xlane.f32.xlu0 %v311
        %v327 = vpop.xlane.xlu0 %326
        %v328 = vmul.f32 %v313, %v287
        %v329 = vmul.f32 %v315, %v287
        %v330 = vmul.f32 %v317, %v287
        %v331 = vmul.f32 %v319, %v287
        %v332 = vmul.f32 %v321, %v287
        %v333 = vmul.f32 %v323, %v287
        %v334 = vmul.f32 %v325, %v287
        %v335 = vmul.f32 %v327, %v287
        %v336 = vadd.f32 %v328, 1e-05
        %v337 = vadd.f32 %v329, 1e-05
        %v338 = vadd.f32 %v330, 1e-05
        %v339 = vadd.f32 %v331, 1e-05
        %v340 = vadd.f32 %v332, 1e-05
        %v341 = vadd.f32 %v333, 1e-05
        %v342 = vadd.f32 %v334, 1e-05
        %v343 = vadd.f32 %v335, 1e-05
        %v344 = vrsqrt.pop %v336
        %v345 = vrsqrt.pop %v337
        %v346 = vrsqrt.pop %v338
        %v347 = vrsqrt.pop %v339
        %v348 = vrsqrt.pop %v340
        %v349 = vrsqrt.pop %v341
        %v350 = vrsqrt.pop %v342
        %v351 = vrsqrt.pop %v343
        %v352 = vmul.f32 %v296, %v344
        %v353 = vmul.f32 %v297, %v345
        %v354 = vmul.f32 %v298, %v346
        %v355 = vmul.f32 %v299, %v347
        %v356 = vmul.f32 %v300, %v348
        %v357 = vmul.f32 %v301, %v349
        %v358 = vmul.f32 %v302, %v350
        %v359 = vmul.f32 %v303, %v351
        %v360 = vld [vmem:[%s2] sm:$0x1]
        %v362 = vlaneseq
        %v363 = vshrl.u32 %v362, 7
        %v364 = vsub.s32 0, %v363
        %v365 = vrot.slane %v360, %v364
        %v367 = vmul.f32 %v352, %v365
        %v368 = vmul.f32 %v353, %v365
        %v369 = vmul.f32 %v354, %v365
        %v370 = vmul.f32 %v355, %v365
        %v371 = vmul.f32 %v356, %v365
        %v372 = vmul.f32 %v357, %v365
        %v373 = vmul.f32 %v358, %v365
        %v374 = vmul.f32 %v359, %v365
        %v375 = vld [vmem:[%s3] sm:$0x1]
        %v377 = vlaneseq
        %v378 = vshrl.u32 %v377, 7
        %v379 = vsub.s32 0, %v378
        %v380 = vrot.slane %v375, %v379
        %v382 = vadd.f32 %v367, %v380
        %v383 = vadd.f32 %v368, %v380
        %v384 = vadd.f32 %v369, %v380
        %v385 = vadd.f32 %v370, %v380
        %v386 = vadd.f32 %v371, %v380
        %v387 = vadd.f32 %v372, %v380
        %v388 = vadd.f32 %v373, %v380
        %v389 = vadd.f32 %v374, %v380
        %v390 = vpack.c.bf16 %v383, %v382
        %v391 = vpack.c.bf16 %v385, %v384
        %v392 = vpack.c.bf16 %v387, %v386
        %v393 = vpack.c.bf16 %v389, %v388
        %v394 = vld [vmem:[#allocation7] sm:$0xf]
        %v395 = vld [vmem:[#allocation7 + $0x4] sm:$0xf]
        %v396 = vld [vmem:[#allocation7 + $0x8] sm:$0xf]
        %v397 = vld [vmem:[#allocation7 + $0xc] sm:$0xf]
        %v398 = vld [vmem:[#allocation7 + $0x10] sm:$0xf]
        %v399 = vld [vmem:[#allocation7 + $0x14] sm:$0xf]
        %v400 = vld [vmem:[#allocation7 + $0x18] sm:$0xf]
        %v401 = vld [vmem:[#allocation7 + $0x1c] sm:$0xf]
        %v402 = vld [vmem:[#allocation7 + $0x20] sm:$0xf]
        %v403 = vld [vmem:[#allocation7 + $0x24] sm:$0xf]
        %v404 = vld [vmem:[#allocation7 + $0x28] sm:$0xf]
        %v405 = vld [vmem:[#allocation7 + $0x2c] sm:$0xf]
        %v406 = vld [vmem:[#allocation7 + $0x30] sm:$0xf]
        %v407 = vld [vmem:[#allocation7 + $0x34] sm:$0xf]
        %v408 = vld [vmem:[#allocation7 + $0x38] sm:$0xf]
        %v409 = vld [vmem:[#allocation7 + $0x3c] sm:$0xf]
        %v410 = vld [vmem:[%s5] sm:$0x1]
        %v412 = vlaneseq
        %v413 = vshrl.u32 %v412, 7
        %v414 = vsub.s32 0, %v413
        %v415 = vrot.slane %v410, %v414
        %v433 = vunpack.c.l.b16 %v394
        %v434 = vunpack.c.l.b16 %v395
        %v435 = vunpack.c.l.b16 %v396
        %v436 = vunpack.c.l.b16 %v397
        %v437 = vunpack.c.l.b16 %v398
        %v438 = vunpack.c.l.b16 %v399
        %v439 = vunpack.c.l.b16 %v400
        %v440 = vunpack.c.l.b16 %v401
        %v441 = vunpack.c.l.b16 %v402
        %v442 = vunpack.c.l.b16 %v403
        %v443 = vunpack.c.l.b16 %v404
        %v444 = vunpack.c.l.b16 %v405
        %v445 = vunpack.c.l.b16 %v406
        %v446 = vunpack.c.l.b16 %v407
        %v447 = vunpack.c.l.b16 %v408
        %v448 = vunpack.c.l.b16 %v409
        %v449 = vpack.c.b16 %v434, %v433
        %v450 = vpack.c.b16 %v436, %v435
        %v451 = vpack.c.b16 %v438, %v437
        %v452 = vpack.c.b16 %v440, %v439
        %v453 = vpack.c.b16 %v442, %v441
        %v454 = vpack.c.b16 %v444, %v443
        %v455 = vpack.c.b16 %v446, %v445
        %v456 = vpack.c.b16 %v448, %v447
        %465 = vmatprep.subr.bf16.mxu0 0
        %466 = vmatpush1.bf16.msra.mxu0 %v456
        %467 = vmatprep.subr.bf16.mxu0 0
        %468 = vmatpush1.bf16.msra.mxu0 %v455
        %469 = vmatprep.subr.bf16.mxu0 0
        %470 = vmatpush1.bf16.msra.mxu0 %v454
        %471 = vmatprep.subr.bf16.mxu0 0
        %472 = vmatpush1.bf16.msra.mxu0 %v453
        %473 = vmatprep.subr.bf16.mxu0 0
        %474 = vmatpush1.bf16.msra.mxu0 %v452
        %475 = vmatprep.subr.bf16.mxu0 0
        %476 = vmatpush1.bf16.msra.mxu0 %v451
        %477 = vmatprep.subr.bf16.mxu0 0
        %478 = vmatpush1.bf16.msra.mxu0 %v450
        %479 = vmatprep.subr.bf16.mxu0 0
        %480 = vmatpush1.bf16.msra.mxu0 %v449
        %481 = vmatprep.subr.bf16.mxu0 0
        %482 = vmatpush2.bf16.msra.mxu0 0
        %483 = vmatprep.subr.bf16.mxu0 0
        %484 = vmatpush2.bf16.msra.mxu0 0
        %485 = vmatprep.subr.bf16.mxu0 0
        %486 = vmatpush2.bf16.msra.mxu0 0
        %487 = vmatprep.subr.bf16.mxu0 0
        %488 = vmatpush2.bf16.msra.mxu0 0
        %489 = vmatprep.subr.bf16.mxu0 0
        %490 = vmatpush2.bf16.msra.mxu0 0
        %491 = vmatprep.subr.bf16.mxu0 0
        %492 = vmatpush2.bf16.msra.mxu0 0
        %493 = vmatprep.subr.bf16.mxu0 0
        %494 = vmatpush2.bf16.msra.mxu0 0
        %495 = vmatprep.subr.bf16.mxu0 0
        %496 = vmatpush2.bf16.msra.mxu0 0
        %497 = vmatprep.mubr.bf16.mxu0 0
        %498 = vmatmul.mubr.bf16.gmra.mxu0 %v390
        %v499 = vpop.f32.mrf.mxu0
        %v500 = vadd.f32 %v415, %v499
        %v501 = vpop.f32.mrf.mxu0
        %v502 = vpop.f32.mrf.mxu0
        %v503 = vadd.f32 %v415, %v502
        %v504 = vpop.f32.mrf.mxu0
        %505 = vmatprep.mubr.bf16.mxu0 0
        %506 = vmatmul.mubr.bf16.gmra.mxu0 %v391
        %v507 = vpop.f32.mrf.mxu0
        %v508 = vadd.f32 %v415, %v507
        %v509 = vpop.f32.mrf.mxu0
        %v510 = vpop.f32.mrf.mxu0
        %v511 = vadd.f32 %v415, %v510
        %v512 = vpop.f32.mrf.mxu0
        %513 = vmatprep.mubr.bf16.mxu0 0
        %514 = vmatmul.mubr.bf16.gmra.mxu0 %v392
        %v515 = vpop.f32.mrf.mxu0
        %v516 = vadd.f32 %v415, %v515
        %v517 = vpop.f32.mrf.mxu0
        %v518 = vpop.f32.mrf.mxu0
        %v519 = vadd.f32 %v415, %v518
        %v520 = vpop.f32.mrf.mxu0
        %521 = vmatprep.mubr.bf16.mxu0 0
        %522 = vmatmul.mubr.bf16.gmra.mxu0 %v393
        %v523 = vpop.f32.mrf.mxu0
        %v524 = vadd.f32 %v415, %v523
        %v525 = vpop.f32.mrf.mxu0
        %v526 = vpop.f32.mrf.mxu0
        %v527 = vadd.f32 %v415, %v526
        %v528 = vpop.f32.mrf.mxu0
        %529 = vdwg.mxu0
        %v530 = vadd.f32 %v500, %v263
        %v531 = vadd.f32 %v503, %v264
        %v532 = vadd.f32 %v508, %v265
        %v533 = vadd.f32 %v511, %v266
        %v534 = vadd.f32 %v516, %v267
        %v535 = vadd.f32 %v519, %v268
        %v536 = vadd.f32 %v524, %v269
        %v537 = vadd.f32 %v527, %v270
        %538 = vst [vmem:[%s259] sm:$0xff] %v530
        %539 = vst [vmem:[%s259 + $0x8] sm:$0xff] %v531
        %540 = vst [vmem:[%s259 + $0x10] sm:$0xff] %v532
        %541 = vst [vmem:[%s259 + $0x18] sm:$0xff] %v533
        %542 = vst [vmem:[%s259 + $0x20] sm:$0xff] %v534
        %543 = vst [vmem:[%s259 + $0x28] sm:$0xff] %v535
        %544 = vst [vmem:[%s259 + $0x30] sm:$0xff] %v536
        %545 = vst [vmem:[%s259 + $0x38] sm:$0xff] %v537
        %s546 = sand.u32 %s143, 1
        %s547 = scalar_lea.sflag [#allocation6], %s546
        %s548 = sand.u32 %s143, 1
        %s549 = smul.addr %s548, 64
        %s550 = scalar_lea.vmem [#allocation9], %s549
        // Predicated region
        $region49: #{tpu_custom_call.1} parent=39 // pred_check
          %p551 = pneg %p153
        $region50: #{tpu_custom_call.1} parent=39 // pred_check_branch
          %553 = sbr.rel (%p551) target = $region52
        $region51: #{tpu_custom_call.1} parent=39 // pred_region
          %s554 = smul.u32 8, %s25
          %s556 = ssub.s32 1024, 1024
          %557 = vsyncadd %s547, %s556
          %s558 = smul.addr %s554, 128
          %s559 = scalar_lea.hbm %s6, %s558
          %s560 = sshll.u32 %s550, 4
          %s561 = int_to_ptr.vmem [resolvable:$true] %s560
          %566 = dma.vmem_to_hbm [thread:$0]  %s561, 1024, %s559, %s547, 128, 128, 8
        $region52: #{tpu_custom_call.1} parent=39 // pred_fallthru
          _
      $region40: #{tpu_custom_call.1} parent=5 // pred_fallthru
        _
      %p567 = scmp.le.s32.totalorder 2, %s20
      // Predicated region
      $region53: #{tpu_custom_call.1} parent=5 // pred_check
        %p568 = pneg %p567
      $region54: #{tpu_custom_call.1} parent=5 // pred_check_branch
        %570 = sbr.rel (%p568) target = $region56
      $region55: #{tpu_custom_call.1} parent=5 // pred_region
        %s571 = ssub.s32 %s20, 2
        // Predicated region
        $region57: #{tpu_custom_call.1} parent=55 // pred_check
          %p572 = pneg %p159
        $region58: #{tpu_custom_call.1} parent=55 // pred_check_branch
          %574 = sbr.rel (%p572) target = $region60
        $region59: #{tpu_custom_call.1} parent=55 // pred_region
          %s575 = sand.u32 %s144, 1
          %s576 = scalar_lea.sflag [#allocation6], %s575
          %s577 = sand.u32 %s144, 1
          %s578 = smul.addr %s577, 64
          %s579 = scalar_lea.vmem [#allocation9], %s578
          %580 = dma.done %s576, 1024
        $region60: #{tpu_custom_call.1} parent=55 // pred_fallthru
          _
      $region56: #{tpu_custom_call.1} parent=5 // pred_fallthru
        _
    $region6: #{tpu_custom_call.1} parent=1 // loop_footer
      %s24 = sadd.s32 1, %s20
    $region7: #{tpu_custom_call.1} parent=1 // loop_footer_branch
      %19 = sbr.rel target = $region3
    $region8: #{tpu_custom_call.1} parent=1 // loop_exit
      _
    %581 = vsyncpa [#allocation5], 1
    %s582 = scalar_lea.sflag [#allocation5], 1
    %583 = vsyncpa %s582, 1
    %584 = vsyncpa [#allocation8], 1
    %585 = vsyncpa [#allocation6], 1
    %s586 = scalar_lea.sflag [#allocation6], 1
    %587 = vsyncpa %s586, 1

</llo_original>
